<compile_context>
chip_gen: v7x
topology: tpu7x:2x2x1
jax: 0.10.0
libtpu: 0.0.40
codegen_flags: <defaults>
</compile_context>

<pallas_src>
import functools

import jax
import jax.numpy as jnp
from jax import lax
from jax.experimental import pallas as pl
from jax.experimental.pallas import tpu as pltpu


def _transition_kernel(x_ref, trans_ref, start_ref, end_ref, *, L, Lp, T, Rb):
    g = pl.program_id(0)

    @pl.when(g == 0)
    def _init():
        trans_ref[...] = jnp.zeros_like(trans_ref)
        start_ref[...] = jnp.zeros_like(start_ref)
        end_ref[...] = jnp.zeros_like(end_ref)

    flat = x_ref[...]                        # (Rb, Tp) bf16, Rb = Bb * Lp rows
    Tp = flat.shape[-1]

    # ---- start / end tag counts: one tiny selector matmul on the MXU ----
    # selector row 0 picks positions l == 0, row 1 picks l == L-1 (rows 2..7
    # are zero padding to stay sublane-friendly). f32 MXU accumulation keeps
    # the counts exact for any batch size.
    row8 = lax.broadcasted_iota(jnp.int32, (8, Rb), 0)
    pos8 = lax.broadcasted_iota(jnp.int32, (8, Rb), 1) & (Lp - 1)   # l index
    sel = (((row8 == 0) & (pos8 == 0)) |
           ((row8 == 1) & (pos8 == L - 1))).astype(jnp.bfloat16)
    se = lax.dot_general(
        sel, flat,
        dimension_numbers=(((1,), (0,)), ((), ())),        # (8, Rb) @ (Rb, Tp)
        preferred_element_type=jnp.float32)                # -> (8, Tp)
    start_ref[...] += se[0:1, :]
    end_ref[...] += se[1:2, :]

    # ---- transition counts: ONE MXU matmul, contraction dim Rb - 1 ----
    prev = flat[:-1, :]                      # tag one-hot at position l
    nxt = flat[1:, :]                        # tag one-hot at position l + 1
    # Keep only within-sample pairs with l < L-1 (drops padding rows and
    # cross-sample pairs; zero-padded samples contribute nothing anyway).
    keep = (lax.broadcasted_iota(jnp.int32, (Rb - 1, Tp), 0) & (Lp - 1)) < (L - 1)
    prev = jnp.where(keep, prev, jnp.zeros_like(prev))
    trans_ref[...] += lax.dot_general(
        prev, nxt,
        dimension_numbers=(((0,), (0,)), ((), ())),   # contract rows: prev^T @ nxt
        preferred_element_type=jnp.float32)

    # ---- finalize: normalizer = row softmax over the real tag columns ----
    @pl.when(g == pl.num_programs(0) - 1)
    def _finalize():
        def masked_row_softmax(v):
            col = lax.broadcasted_iota(jnp.int32, v.shape, 1)
            valid = col < T
            vm = jnp.where(valid, v, -1e30)
            m = jnp.max(vm, axis=-1, keepdims=True)
            e = jnp.where(valid, jnp.exp(vm - m), 0.0)
            return e / jnp.sum(e, axis=-1, keepdims=True)

        # scaler (relu) is a no-op on softmax output, so it is not emitted.
        trans_ref[...] = masked_row_softmax(trans_ref[...])
        start_ref[...] = masked_row_softmax(start_ref[...])
        end_ref[...] = masked_row_softmax(end_ref[...])


def transition_scorer(test_reps, support_target, label_reps=None):
    """Pallas forward pass. test_reps / label_reps kept for API parity."""
    del test_reps, label_reps
    B, L, T = support_target.shape

    LANE = 128
    Tp = pl.cdiv(T, LANE) * LANE                 # lane-dense tag dim
    Lp = max(16, pl.next_power_of_2(L))          # bf16 sublane pack + pow2 mask

    # Samples per grid step: as many as a ~2 MiB bf16 input block allows
    # (double-buffered by Pallas + in-kernel temporaries stay well within
    # the 32 MiB scoped VMEM limit on v5e/v6e/v7x).
    bytes_per_sample = Lp * Tp * 2
    Bb = max(1, min(B, (2 << 20) // bytes_per_sample))
    Bp = pl.cdiv(B, Bb) * Bb
    Rb = Bb * Lp

    x = support_target.astype(jnp.bfloat16)      # exact for one-hot 0/1
    x = jnp.pad(x, ((0, Bp - B), (0, Lp - L), (0, Tp - T)))
    x = x.reshape(Bp * Lp, Tp)                   # contiguous collapse (free)

    kernel = functools.partial(_transition_kernel, L=L, Lp=Lp, T=T, Rb=Rb)
    trans, start, end = pl.pallas_call(
        kernel,
        grid=(Bp // Bb,),
        in_specs=[pl.BlockSpec((Rb, Tp), lambda g: (g, 0))],
        out_specs=[
            pl.BlockSpec((Tp, Tp), lambda g: (0, 0)),
            pl.BlockSpec((1, Tp), lambda g: (0, 0)),
            pl.BlockSpec((1, Tp), lambda g: (0, 0)),
        ],
        out_shape=[
            jax.ShapeDtypeStruct((Tp, Tp), jnp.float32),
            jax.ShapeDtypeStruct((1, Tp), jnp.float32),
            jax.ShapeDtypeStruct((1, Tp), jnp.float32),
        ],
        compiler_params=pltpu.CompilerParams(
            dimension_semantics=("arbitrary",),   # accumulating axis: NOT parallel
            vmem_limit_bytes=32 * 1024 * 1024),
    )(x)
    return trans[:T, :T], start[0, :T], end[0, :T]


def reference(support_target):
    prev = support_target[:, :-1, :]
    nxt = support_target[:, 1:, :]
    trans = jnp.einsum("bli,blj->ij", prev, nxt)
    start = jnp.sum(support_target[:, 0, :], axis=0)
    end = jnp.sum(support_target[:, -1, :], axis=0)
    sm = lambda v: jax.nn.softmax(v, axis=-1)
    return (jnp.maximum(sm(trans), 0.0),
            jnp.maximum(sm(start), 0.0),
            jnp.maximum(sm(end), 0.0))


if __name__ == "__main__":
    key = jax.random.PRNGKey(0)
    B, L, T, H = 2, 16, 8, 32  # batch, support seq len, num_tags, hidden

    k_tags, k_test, k_label = jax.random.split(key, 3)
    tag_ids = jax.random.randint(k_tags, (B, L), 0, T)
    support_target = jax.nn.one_hot(tag_ids, T, dtype=jnp.float32)  # [B, L, T]
    test_reps = jax.random.normal(k_test, (B, L, H), dtype=jnp.float32)
    label_reps = jax.random.normal(k_label, (T, H), dtype=jnp.float32)

    trans, start, end = transition_scorer(test_reps, support_target, label_reps)
    trans = jax.block_until_ready(trans)
    start = jax.block_until_ready(start)
    end = jax.block_until_ready(end)

    r_trans, r_start, r_end = reference(support_target)
    assert jnp.allclose(trans, r_trans, atol=1e-5), "transition mismatch"
    assert jnp.allclose(start, r_start, atol=1e-5), "start transition mismatch"
    assert jnp.allclose(end, r_end, atol=1e-5), "end transition mismatch"

    print("KERNEL_OK")
</pallas_src>

<mosaic_0001>
module attributes {stable_mosaic.version = 11 : i64} {
  func.func @_transition_kernel(%arg0: i32, %arg1: memref<32x128xbf16, #tpu.memory_space<vmem>>, %arg2: memref<128x128xf32, #tpu.memory_space<vmem>>, %arg3: memref<1x128xf32, #tpu.memory_space<vmem>>, %arg4: memref<1x128xf32, #tpu.memory_space<vmem>>) attributes {dimension_semantics = [#tpu.dimension_semantics<arbitrary>], iteration_bounds = array<i64: 1>, scalar_prefetch = 0 : i64, scratch_operands = 0 : i64, tpu.core_type = #tpu.core_type<tc>, window_params = [{transform_indices = @transform_0, window_bounds = array<i64: 32, 128>}, {pipeline_mode = #tpu.pipeline_mode<synchronous>, transform_indices = @transform_1, window_bounds = array<i64: 128, 128>}, {pipeline_mode = #tpu.pipeline_mode<synchronous>, transform_indices = @transform_2, window_bounds = array<i64: 1, 128>}, {pipeline_mode = #tpu.pipeline_mode<synchronous>, transform_indices = @transform_3, window_bounds = array<i64: 1, 128>}]} {
    %c0_i32 = arith.constant 0 : i32
    %0 = arith.cmpi eq, %arg0, %c0_i32 : i32
    %1 = arith.extui %0 : i1 to i32
    %c0_i32_0 = arith.constant 0 : i32
    %2 = arith.cmpi ne, %1, %c0_i32_0 : i32
    scf.if %2 {
      %cst_23 = arith.constant 0.000000e+00 : f32
      %47 = vector.broadcast %cst_23 : f32 to vector<128x128xf32>
      %c0_24 = arith.constant 0 : index
      %c0_25 = arith.constant 0 : index
      %48 = vector.load %arg2[%c0_24, %c0_25] : memref<128x128xf32, #tpu.memory_space<vmem>>, vector<128x128xf32>
      tpu.vector_store %arg2[%c0_24, %c0_25], %47 {strides = array<i32>} : memref<128x128xf32, #tpu.memory_space<vmem>>, vector<128x128xf32>,
      %cst_26 = arith.constant 0.000000e+00 : f32
      %49 = vector.broadcast %cst_26 : f32 to vector<1x128xf32>
      %c0_27 = arith.constant 0 : index
      %c0_28 = arith.constant 0 : index
      %50 = vector.load %arg3[%c0_27, %c0_28] : memref<1x128xf32, #tpu.memory_space<vmem>>, vector<1x128xf32>
      tpu.vector_store %arg3[%c0_27, %c0_28], %49 {strides = array<i32>} : memref<1x128xf32, #tpu.memory_space<vmem>>, vector<1x128xf32>,
      %cst_29 = arith.constant 0.000000e+00 : f32
      %51 = vector.broadcast %cst_29 : f32 to vector<1x128xf32>
      %c0_30 = arith.constant 0 : index
      %c0_31 = arith.constant 0 : index
      %52 = vector.load %arg4[%c0_30, %c0_31] : memref<1x128xf32, #tpu.memory_space<vmem>>, vector<1x128xf32>
      tpu.vector_store %arg4[%c0_30, %c0_31], %51 {strides = array<i32>} : memref<1x128xf32, #tpu.memory_space<vmem>>, vector<1x128xf32>,
    } else {
    }
    %c0 = arith.constant 0 : index
    %c0_1 = arith.constant 0 : index
    %3 = vector.load %arg1[%c0, %c0_1] : memref<32x128xbf16, #tpu.memory_space<vmem>>, vector<32x128xbf16>
    %4 = tpu.iota {dimensions = array<i32: 0>} : vector<8x32xi32>
    %5 = tpu.iota {dimensions = array<i32: 1>} : vector<8x32xi32>
    %c15_i32 = arith.constant 15 : i32
    %6 = vector.broadcast %c15_i32 : i32 to vector<8x32xi32>
    %7 = arith.andi %5, %6 : vector<8x32xi32>
    %c0_i32_2 = arith.constant 0 : i32
    %8 = vector.broadcast %c0_i32_2 : i32 to vector<8x32xi32>
    %9 = arith.cmpi eq, %4, %8 : vector<8x32xi32>
    %c0_i32_3 = arith.constant 0 : i32
    %10 = vector.broadcast %c0_i32_3 : i32 to vector<8x32xi32>
    %11 = arith.cmpi eq, %7, %10 : vector<8x32xi32>
    %12 = arith.andi %9, %11 : vector<8x32xi1>
    %c1_i32 = arith.constant 1 : i32
    %13 = vector.broadcast %c1_i32 : i32 to vector<8x32xi32>
    %14 = arith.cmpi eq, %4, %13 : vector<8x32xi32>
    %c15_i32_4 = arith.constant 15 : i32
    %15 = vector.broadcast %c15_i32_4 : i32 to vector<8x32xi32>
    %16 = arith.cmpi eq, %7, %15 : vector<8x32xi32>
    %17 = arith.andi %14, %16 : vector<8x32xi1>
    %18 = arith.ori %12, %17 : vector<8x32xi1>
    %19 = arith.extui %18 : vector<8x32xi1> to vector<8x32xi32>
    %20 = arith.sitofp %19 : vector<8x32xi32> to vector<8x32xf32>
    %21 = arith.truncf %20 : vector<8x32xf32> to vector<8x32xbf16>
    %cst = arith.constant dense<0.000000e+00> : vector<8x128xf32>
    %22 = tpu.matmul %21, %3, %cst {dimension_numbers = #tpu.dot_dimension_numbers<[1], [0], [0], [1], [0, 0, 1, 1], [], []>} : vector<8x32xbf16>, vector<32x128xbf16>, vector<8x128xf32> -> vector<8x128xf32>
    %c0_5 = arith.constant 0 : index
    %c0_6 = arith.constant 0 : index
    %23 = vector.load %arg3[%c0_5, %c0_6] : memref<1x128xf32, #tpu.memory_space<vmem>>, vector<1x128xf32>
    %24 = vector.extract_strided_slice %22 {offsets = [0, 0], sizes = [1, 128], strides = [1, 1]} : vector<8x128xf32> to vector<1x128xf32>
    %25 = arith.addf %23, %24 : vector<1x128xf32>
    %c0_7 = arith.constant 0 : index
    %c0_8 = arith.constant 0 : index
    %26 = vector.load %arg3[%c0_7, %c0_8] : memref<1x128xf32, #tpu.memory_space<vmem>>, vector<1x128xf32>
    tpu.vector_store %arg3[%c0_7, %c0_8], %25 {strides = array<i32>} : memref<1x128xf32, #tpu.memory_space<vmem>>, vector<1x128xf32>,
    %c0_9 = arith.constant 0 : index
    %c0_10 = arith.constant 0 : index
    %27 = vector.load %arg4[%c0_9, %c0_10] : memref<1x128xf32, #tpu.memory_space<vmem>>, vector<1x128xf32>
    %28 = vector.extract_strided_slice %22 {offsets = [1, 0], sizes = [1, 128], strides = [1, 1]} : vector<8x128xf32> to vector<1x128xf32>
    %29 = arith.addf %27, %28 : vector<1x128xf32>
    %c0_11 = arith.constant 0 : index
    %c0_12 = arith.constant 0 : index
    %30 = vector.load %arg4[%c0_11, %c0_12] : memref<1x128xf32, #tpu.memory_space<vmem>>, vector<1x128xf32>
    tpu.vector_store %arg4[%c0_11, %c0_12], %29 {strides = array<i32>} : memref<1x128xf32, #tpu.memory_space<vmem>>, vector<1x128xf32>,
    %31 = vector.extract_strided_slice %3 {offsets = [0, 0], sizes = [31, 128], strides = [1, 1]} : vector<32x128xbf16> to vector<31x128xbf16>
    %32 = vector.extract_strided_slice %3 {offsets = [1, 0], sizes = [31, 128], strides = [1, 1]} : vector<32x128xbf16> to vector<31x128xbf16>
    %33 = tpu.iota {dimensions = array<i32: 0>} : vector<31x128xi32>
    %c15_i32_13 = arith.constant 15 : i32
    %34 = vector.broadcast %c15_i32_13 : i32 to vector<31x128xi32>
    %35 = arith.andi %33, %34 : vector<31x128xi32>
    %c15_i32_14 = arith.constant 15 : i32
    %36 = vector.broadcast %c15_i32_14 : i32 to vector<31x128xi32>
    %37 = arith.cmpi slt, %35, %36 : vector<31x128xi32>
    %cst_15 = arith.constant 0.000000e+00 : bf16
    %38 = vector.broadcast %cst_15 : bf16 to vector<31x128xbf16>
    %39 = arith.select %37, %31, %38 : vector<31x128xi1>, vector<31x128xbf16>
    %c0_16 = arith.constant 0 : index
    %c0_17 = arith.constant 0 : index
    %40 = vector.load %arg2[%c0_16, %c0_17] : memref<128x128xf32, #tpu.memory_space<vmem>>, vector<128x128xf32>
    %cst_18 = arith.constant dense<0.000000e+00> : vector<128x128xf32>
    %41 = tpu.matmul %39, %32, %cst_18 {dimension_numbers = #tpu.dot_dimension_numbers<[0], [0], [1], [1], [0, 1, 1, 1], [], []>} : vector<31x128xbf16>, vector<31x128xbf16>, vector<128x128xf32> -> vector<128x128xf32>
    %42 = arith.addf %40, %41 : vector<128x128xf32>
    %c0_19 = arith.constant 0 : index
    %c0_20 = arith.constant 0 : index
    %43 = vector.load %arg2[%c0_19, %c0_20] : memref<128x128xf32, #tpu.memory_space<vmem>>, vector<128x128xf32>
    tpu.vector_store %arg2[%c0_19, %c0_20], %42 {strides = array<i32>} : memref<128x128xf32, #tpu.memory_space<vmem>>, vector<128x128xf32>,
    %c0_i32_21 = arith.constant 0 : i32
    %44 = arith.cmpi eq, %arg0, %c0_i32_21 : i32
    %45 = arith.extui %44 : i1 to i32
    %c0_i32_22 = arith.constant 0 : i32
    %46 = arith.cmpi ne, %45, %c0_i32_22 : i32
    scf.if %46 {
      %c0_23 = arith.constant 0 : index
      %c0_24 = arith.constant 0 : index
      %47 = vector.load %arg2[%c0_23, %c0_24] : memref<128x128xf32, #tpu.memory_space<vmem>>, vector<128x128xf32>
      %48 = tpu.iota {dimensions = array<i32: 1>} : vector<128x128xi32>
      %c8_i32 = arith.constant 8 : i32
      %49 = vector.broadcast %c8_i32 : i32 to vector<128x128xi32>
      %50 = arith.cmpi slt, %48, %49 : vector<128x128xi32>
      %cst_25 = arith.constant -1.000000e+30 : f32
      %51 = vector.broadcast %cst_25 : f32 to vector<128x128xf32>
      %52 = arith.select %50, %47, %51 : vector<128x128xi1>, vector<128x128xf32>
      %cst_26 = arith.constant dense<0xFF800000> : vector<128xf32>
      %53 = vector.multi_reduction <maximumf>, %52, %cst_26 [1] : vector<128x128xf32> to vector<128xf32>
      %54 = vector.shape_cast %53 : vector<128xf32> to vector<128x1xf32>
      %55 = vector.broadcast %54 : vector<128x1xf32> to vector<128x128xf32>
      %56 = arith.subf %52, %55 : vector<128x128xf32>
      %57 = math.exp %56 : vector<128x128xf32>
      %cst_27 = arith.constant 0.000000e+00 : f32
      %58 = vector.broadcast %cst_27 : f32 to vector<128x128xf32>
      %59 = arith.select %50, %57, %58 : vector<128x128xi1>, vector<128x128xf32>
      %cst_28 = arith.constant dense<0.000000e+00> : vector<128xf32>
      %60 = vector.multi_reduction <add>, %59, %cst_28 [1] : vector<128x128xf32> to vector<128xf32>
      %61 = vector.shape_cast %60 : vector<128xf32> to vector<128x1xf32>
      %62 = vector.broadcast %61 : vector<128x1xf32> to vector<128x128xf32>
      %63 = arith.divf %59, %62 : vector<128x128xf32>
      %c0_29 = arith.constant 0 : index
      %c0_30 = arith.constant 0 : index
      %64 = vector.load %arg2[%c0_29, %c0_30] : memref<128x128xf32, #tpu.memory_space<vmem>>, vector<128x128xf32>
      tpu.vector_store %arg2[%c0_29, %c0_30], %63 {strides = array<i32>} : memref<128x128xf32, #tpu.memory_space<vmem>>, vector<128x128xf32>,
      %c0_31 = arith.constant 0 : index
      %c0_32 = arith.constant 0 : index
      %65 = vector.load %arg3[%c0_31, %c0_32] : memref<1x128xf32, #tpu.memory_space<vmem>>, vector<1x128xf32>
      %66 = tpu.iota {dimensions = array<i32: 1>} : vector<1x128xi32>
      %c8_i32_33 = arith.constant 8 : i32
      %67 = vector.broadcast %c8_i32_33 : i32 to vector<1x128xi32>
      %68 = arith.cmpi slt, %66, %67 : vector<1x128xi32>
      %cst_34 = arith.constant -1.000000e+30 : f32
      %69 = vector.broadcast %cst_34 : f32 to vector<1x128xf32>
      %70 = arith.select %68, %65, %69 : vector<1x128xi1>, vector<1x128xf32>
      %cst_35 = arith.constant dense<0xFF800000> : vector<1xf32>
      %71 = vector.multi_reduction <maximumf>, %70, %cst_35 [1] : vector<1x128xf32> to vector<1xf32>
      %72 = vector.shape_cast %71 : vector<1xf32> to vector<1x1xf32>
      %73 = vector.broadcast %72 : vector<1x1xf32> to vector<1x128xf32>
      %74 = arith.subf %70, %73 : vector<1x128xf32>
      %75 = math.exp %74 : vector<1x128xf32>
      %cst_36 = arith.constant 0.000000e+00 : f32
      %76 = vector.broadcast %cst_36 : f32 to vector<1x128xf32>
      %77 = arith.select %68, %75, %76 : vector<1x128xi1>, vector<1x128xf32>
      %cst_37 = arith.constant dense<0.000000e+00> : vector<1xf32>
      %78 = vector.multi_reduction <add>, %77, %cst_37 [1] : vector<1x128xf32> to vector<1xf32>
      %79 = vector.shape_cast %78 : vector<1xf32> to vector<1x1xf32>
      %80 = vector.broadcast %79 : vector<1x1xf32> to vector<1x128xf32>
      %81 = arith.divf %77, %80 : vector<1x128xf32>
      %c0_38 = arith.constant 0 : index
      %c0_39 = arith.constant 0 : index
      %82 = vector.load %arg3[%c0_38, %c0_39] : memref<1x128xf32, #tpu.memory_space<vmem>>, vector<1x128xf32>
      tpu.vector_store %arg3[%c0_38, %c0_39], %81 {strides = array<i32>} : memref<1x128xf32, #tpu.memory_space<vmem>>, vector<1x128xf32>,
      %c0_40 = arith.constant 0 : index
      %c0_41 = arith.constant 0 : index
      %83 = vector.load %arg4[%c0_40, %c0_41] : memref<1x128xf32, #tpu.memory_space<vmem>>, vector<1x128xf32>
      %84 = tpu.iota {dimensions = array<i32: 1>} : vector<1x128xi32>
      %c8_i32_42 = arith.constant 8 : i32
      %85 = vector.broadcast %c8_i32_42 : i32 to vector<1x128xi32>
      %86 = arith.cmpi slt, %84, %85 : vector<1x128xi32>
      %cst_43 = arith.constant -1.000000e+30 : f32
      %87 = vector.broadcast %cst_43 : f32 to vector<1x128xf32>
      %88 = arith.select %86, %83, %87 : vector<1x128xi1>, vector<1x128xf32>
      %cst_44 = arith.constant dense<0xFF800000> : vector<1xf32>
      %89 = vector.multi_reduction <maximumf>, %88, %cst_44 [1] : vector<1x128xf32> to vector<1xf32>
      %90 = vector.shape_cast %89 : vector<1xf32> to vector<1x1xf32>
      %91 = vector.broadcast %90 : vector<1x1xf32> to vector<1x128xf32>
      %92 = arith.subf %88, %91 : vector<1x128xf32>
      %93 = math.exp %92 : vector<1x128xf32>
      %cst_45 = arith.constant 0.000000e+00 : f32
      %94 = vector.broadcast %cst_45 : f32 to vector<1x128xf32>
      %95 = arith.select %86, %93, %94 : vector<1x128xi1>, vector<1x128xf32>
      %cst_46 = arith.constant dense<0.000000e+00> : vector<1xf32>
      %96 = vector.multi_reduction <add>, %95, %cst_46 [1] : vector<1x128xf32> to vector<1xf32>
      %97 = vector.shape_cast %96 : vector<1xf32> to vector<1x1xf32>
      %98 = vector.broadcast %97 : vector<1x1xf32> to vector<1x128xf32>
      %99 = arith.divf %95, %98 : vector<1x128xf32>
      %c0_47 = arith.constant 0 : index
      %c0_48 = arith.constant 0 : index
      %100 = vector.load %arg4[%c0_47, %c0_48] : memref<1x128xf32, #tpu.memory_space<vmem>>, vector<1x128xf32>
      tpu.vector_store %arg4[%c0_47, %c0_48], %99 {strides = array<i32>} : memref<1x128xf32, #tpu.memory_space<vmem>>, vector<1x128xf32>,
    } else {
    }
    return
  }
  func.func @transform_0(%arg0: i32) -> (i32, i32) {
    %c0_i32 = arith.constant 0 : i32
    %c0_i32_0 = arith.constant 0 : i32
    return %arg0, %c0_i32 : i32, i32
  }
  func.func @transform_1(%arg0: i32) -> (i32, i32) {
    %c0_i32 = arith.constant 0 : i32
    %c0_i32_0 = arith.constant 0 : i32
    %c0_i32_1 = arith.constant 0 : i32
    return %c0_i32, %c0_i32_0 : i32, i32
  }
  func.func @transform_2(%arg0: i32) -> (i32, i32) {
    %c0_i32 = arith.constant 0 : i32
    %c0_i32_0 = arith.constant 0 : i32
    %c0_i32_1 = arith.constant 0 : i32
    return %c0_i32, %c0_i32_0 : i32, i32
  }
  func.func @transform_3(%arg0: i32) -> (i32, i32) {
    %c0_i32 = arith.constant 0 : i32
    %c0_i32_0 = arith.constant 0 : i32
    %c0_i32_1 = arith.constant 0 : i32
    return %c0_i32, %c0_i32_0 : i32, i32
  }
}

</mosaic_0001>

<llo_original>
// kernel: tpu_custom_call.1
$region0: #{tpu_custom_call.1}
  #allocation0 [shape = 'u32[]', space=smem, size = 0x4, offset = 0x4, fixed_abs, tag = 'smem constant byte address 0x4 - core index']
  #allocation1 [shape = 'u32[144,128]{1,0:T(1,128)}', space=vmem, size = 0x12000, scoped, tag = 'internal scratch']
  %s0 = inlined_call_operand.hbm [shape: bf16[32,128], index: 0, kind: input, shape index: {}]
  %s1 = inlined_call_operand.hbm [shape: f32[128,128], index: 1, kind: output, shape index: {0}]
  %s2 = inlined_call_operand.hbm [shape: f32[1,128], index: 2, kind: output, shape index: {1}]
  %s3 = inlined_call_operand.hbm [shape: f32[1,128], index: 3, kind: output, shape index: {2}]
  %4 = xla_tuple %s1, %s2, %s3
  %s5 = sld [smem:[#allocation0]]
  $region42: #{tpu_custom_call.1} parent=0
    _
  %s7 = ssub.s32 1, %s5
  %s8 = scalar_select 0, %s7, %s5
  $region1: #{tpu_custom_call.1} parent=0
    #allocation2 [shape = 'u8[8192]{0}', space=vmem, size = 0x2000, scoped, tag = 'input window, operand 0, single buffered']
    #allocation3 [shape = 's32[1]{0}', space=sflag, size = 0x4, scoped, tag = 'scoped memory for tpu_custom_call.1']
    #allocation4 [shape = 's32[1]{0}', space=sflag, size = 0x4, scoped, tag = 'scoped memory for tpu_custom_call.1']
    #allocation5 [shape = 'u8[65536]{0}', space=vmem, size = 0x10000, scoped, tag = 'output window, operand 0, single buffered']
    #allocation6 [shape = 'u8[512]{0}', space=vmem, size = 0x400, scoped, tag = 'output window, operand 1, single buffered']
    #allocation7 [shape = 's32[1]{0}', space=sflag, size = 0x4, scoped, tag = 'scoped memory for tpu_custom_call.1']
    #allocation8 [shape = 'u8[512]{0}', space=vmem, size = 0x400, scoped, tag = 'output window, operand 2, single buffered']
    %9 = vsyncpa [#allocation3], 0
    %10 = vsyncpa [#allocation4], 0
    %11 = vsyncpa [#allocation7], 0
    // Predicated region
    $region2: #{tpu_custom_call.1} parent=1 // pred_check
      _
    $region3: #{tpu_custom_call.1} parent=1 // pred_check_branch
      %13 = sbr.rel (0) target = $region5
    $region4: #{tpu_custom_call.1} parent=1 // pred_region
      %s15 = ssub.s32 256, 256
      %16 = vsyncadd [#allocation3], %s15
      %s17 = sshll.u32 [#allocation2], 4
      %s18 = int_to_ptr.vmem [resolvable:$true] %s17
      %23 = dma.hbm_to_vmem [thread:$0]  %s0, 256, %s18, [#allocation3], 64, 64, 4
    $region5: #{tpu_custom_call.1} parent=1 // pred_fallthru
      _
    // Predicated region
    $region6: #{tpu_custom_call.1} parent=1 // pred_check
      _
    $region7: #{tpu_custom_call.1} parent=1 // pred_check_branch
      %25 = sbr.rel (0) target = $region9
    $region8: #{tpu_custom_call.1} parent=1 // pred_region
      %26 = dma.done [#allocation3], 256
    $region9: #{tpu_custom_call.1} parent=1 // pred_fallthru
      _
    %p28 = scmp.eq.s32.totalorder 0, 0
    // Predicated region
    $region10: #{tpu_custom_call.1} parent=1 // pred_check
      %p29 = pneg %p28
    $region11: #{tpu_custom_call.1} parent=1 // pred_check_branch
      %31 = sbr.rel (%p29) target = $region13
    $region12: #{tpu_custom_call.1} parent=1 // pred_region
      %32 = vst [vmem:[#allocation5] sm:$0xff] 0.0
      %33 = vst [vmem:[#allocation5 + $0x8] sm:$0xff] 0.0
      %34 = vst [vmem:[#allocation5 + $0x10] sm:$0xff] 0.0
      %35 = vst [vmem:[#allocation5 + $0x18] sm:$0xff] 0.0
      %36 = vst [vmem:[#allocation5 + $0x20] sm:$0xff] 0.0
      %37 = vst [vmem:[#allocation5 + $0x28] sm:$0xff] 0.0
      %38 = vst [vmem:[#allocation5 + $0x30] sm:$0xff] 0.0
      %39 = vst [vmem:[#allocation5 + $0x38] sm:$0xff] 0.0
      %40 = vst [vmem:[#allocation5 + $0x40] sm:$0xff] 0.0
      %41 = vst [vmem:[#allocation5 + $0x48] sm:$0xff] 0.0
      %42 = vst [vmem:[#allocation5 + $0x50] sm:$0xff] 0.0
      %43 = vst [vmem:[#allocation5 + $0x58] sm:$0xff] 0.0
      %44 = vst [vmem:[#allocation5 + $0x60] sm:$0xff] 0.0
      %45 = vst [vmem:[#allocation5 + $0x68] sm:$0xff] 0.0
      %46 = vst [vmem:[#allocation5 + $0x70] sm:$0xff] 0.0
      %47 = vst [vmem:[#allocation5 + $0x78] sm:$0xff] 0.0
      %48 = vst [vmem:[#allocation6] sm:$0x1] 0.0
      %49 = vst [vmem:[#allocation8] sm:$0x1] 0.0
    $region13: #{tpu_custom_call.1} parent=1 // pred_fallthru
      _
    %v50 = vld [vmem:[#allocation2] sm:$0xf]
    %v51 = vld [vmem:[#allocation2 + $0x4] sm:$0xf]
    %v52 = vld [vmem:[#allocation2 + $0x8] sm:$0xf]
    %v53 = vld [vmem:[#allocation2 + $0xc] sm:$0xf]
    %v54 = vlaneseq
    %v55 = vshrl.u32 %v54, 7
    %v56 = vlaneseq
    %v57 = vand.u32 %v56, 127
    %v58 = vand.u32 %v57, 15
    %vm59 = vcmp.eq.s32.totalorder %v55, 0
    %vm60 = vcmp.eq.s32.totalorder %v58, 0
    %vm61 = vmand %vm59, %vm60
    %vm62 = vcmp.eq.s32.totalorder %v55, 1
    %vm63 = vcmp.eq.s32.totalorder %v58, 15
    %vm64 = vmand %vm62, %vm63
    %vm65 = vmor %vm61, %vm64
    %v66 = vsel %vm65, 1, 0
    %v67 = vcvt.s32.f32 %v66
    %v68 = vpack.c.bf16 %v67, %v67
    %v73 = vunpack.c.l.b16 %v50
    %v74 = vunpack.c.l.b16 %v51
    %v75 = vunpack.c.l.b16 %v52
    %v76 = vunpack.c.l.b16 %v53
    %v77 = vpack.c.b16 %v74, %v73
    %v78 = vpack.c.b16 %v76, %v75
    %vm81 = vcmask 261120
    %v83 = vsel %vm81, %v68, 0
    %85 = vmatprep.subr.bf16.mxu0 0
    %86 = vmatpush1.bf16.msra.mxu0 %v77
    %87 = vmatprep.subr.bf16.mxu0 0
    %88 = vmatpush1.bf16.msra.mxu0 %v78
    %89 = vmatprep.subr.bf16.mxu0 0
    %90 = vmatpush1.bf16.msra.mxu0 0
    %91 = vmatprep.subr.bf16.mxu0 0
    %92 = vmatpush1.bf16.msra.mxu0 0
    %93 = vmatprep.subr.bf16.mxu0 0
    %94 = vmatpush1.bf16.msra.mxu0 0
    %95 = vmatprep.subr.bf16.mxu0 0
    %96 = vmatpush1.bf16.msra.mxu0 0
    %97 = vmatprep.subr.bf16.mxu0 0
    %98 = vmatpush1.bf16.msra.mxu0 0
    %99 = vmatprep.subr.bf16.mxu0 0
    %100 = vmatpush1.bf16.msra.mxu0 0
    %101 = vmatprep.subr.bf16.mxu0 0
    %102 = vmatpush1.bf16.msra.mxu0 0
    %103 = vmatprep.subr.bf16.mxu0 0
    %104 = vmatpush1.bf16.msra.mxu0 0
    %105 = vmatprep.subr.bf16.mxu0 0
    %106 = vmatpush1.bf16.msra.mxu0 0
    %107 = vmatprep.subr.bf16.mxu0 0
    %108 = vmatpush1.bf16.msra.mxu0 0
    %109 = vmatprep.subr.bf16.mxu0 0
    %110 = vmatpush1.bf16.msra.mxu0 0
    %111 = vmatprep.subr.bf16.mxu0 0
    %112 = vmatpush1.bf16.msra.mxu0 0
    %113 = vmatprep.subr.bf16.mxu0 0
    %114 = vmatpush1.bf16.msra.mxu0 0
    %115 = vmatprep.subr.bf16.mxu0 0
    %116 = vmatpush1.bf16.msra.mxu0 0
    %117 = vmatprep.mubr.bf16.mxu0 0
    %118 = vmatmul.mubr.bf16.gmra.mrb[0].mxu0 %v83
    %v119 = vpop.f32.mrb[0].mxu0
    %v120 = vadd.f32 0.0, %v119
    %v121 = vpop.f32.mrb[0].mxu0
    %v122 = vpop.f32.mrb[0].mxu0
    %v123 = vpop.f32.mrb[0].mxu0
    %124 = vdwg.mxu0
    %v125 = vld [vmem:[#allocation6] sm:$0x1]
    %v126 = vadd.f32 %v125, %v120
    %127 = vst [vmem:[#allocation6] sm:$0x1] %v126
    %v128 = vld [vmem:[#allocation8] sm:$0x1]
    %v131 = vunpack.c.l.s4 1966171168
    %v132 = vunpack.c.0.s8 %v131
    %v133 = vlaneseq
    %v134 = vshrl.u32 %v133, 7
    %v135 = vsub.s32 %v132, %v134
    %v136 = vrot.slane %v120, %v135
    %v137 = vcombine.high %v136, %v136
    %v139 = vunpack.c.l.s4 1966171168
    %v140 = vunpack.c.0.s8 %v139
    %v141 = vlaneseq
    %v142 = vshrl.u32 %v141, 7
    %v143 = vsub.s32 %v140, %v142
    %v144 = vrot.slane %v137, %v143
    %v146 = vadd.f32 %v128, %v144
    %147 = vst [vmem:[#allocation8] sm:$0x1] %v146
    %v148 = vadd.s32 %v55, 8
    %v149 = vadd.s32 %v55, 16
    %v150 = vadd.s32 %v55, 24
    %v151 = vand.u32 %v55, 15
    %v152 = vand.u32 %v148, 15
    %v153 = vand.u32 %v149, 15
    %v154 = vand.u32 %v150, 15
    %vm155 = vcmp.lt.s32.totalorder %v151, 15
    %vm156 = vcmp.lt.s32.totalorder %v152, 15
    %vm157 = vcmp.lt.s32.totalorder %v153, 15
    %vm158 = vcmp.lt.s32.totalorder %v154, 15
    %vm159 = vmpackc.low %vm155, %vm155
    %vm160 = vmpackc.low %vm156, %vm156
    %vm161 = vmpackc.low %vm157, %vm157
    %vm162 = vmpackc.low %vm158, %vm158
    %v163 = vsel %vm159, %v50, 0
    %v164 = vsel %vm160, %v51, 0
    %v165 = vsel %vm161, %v52, 0
    %v166 = vsel %vm162, %v53, 0
    %v167 = vld [vmem:[#allocation5] sm:$0xff]
    %v168 = vld [vmem:[#allocation5 + $0x8] sm:$0xff]
    %v169 = vld [vmem:[#allocation5 + $0x10] sm:$0xff]
    %v170 = vld [vmem:[#allocation5 + $0x18] sm:$0xff]
    %v171 = vld [vmem:[#allocation5 + $0x20] sm:$0xff]
    %v172 = vld [vmem:[#allocation5 + $0x28] sm:$0xff]
    %v173 = vld [vmem:[#allocation5 + $0x30] sm:$0xff]
    %v174 = vld [vmem:[#allocation5 + $0x38] sm:$0xff]
    %v175 = vld [vmem:[#allocation5 + $0x40] sm:$0xff]
    %v176 = vld [vmem:[#allocation5 + $0x48] sm:$0xff]
    %v177 = vld [vmem:[#allocation5 + $0x50] sm:$0xff]
    %v178 = vld [vmem:[#allocation5 + $0x58] sm:$0xff]
    %v179 = vld [vmem:[#allocation5 + $0x60] sm:$0xff]
    %v180 = vld [vmem:[#allocation5 + $0x68] sm:$0xff]
    %v181 = vld [vmem:[#allocation5 + $0x70] sm:$0xff]
    %v182 = vld [vmem:[#allocation5 + $0x78] sm:$0xff]
    %v187 = vunpack.c.l.b16 %v163
    %v188 = vunpack.c.l.b16 %v164
    %v189 = vunpack.c.l.b16 %v165
    %v190 = vunpack.c.l.b16 %v166
    %v191 = vpack.c.b16 %v188, %v187
    %v192 = vpack.c.b16 %v190, %v189
    %195 = vxpose.xlu0.c.b16.start [1/8] %v191, 128
    %196 = vxpose.xlu0.c.b16.cont [2/8] %v192, 128
    %197 = vxpose.xlu0.c.b16.cont [3/8] 0, 128
    %198 = vxpose.xlu0.c.b16.cont [4/8] 0, 128
    %199 = vxpose.xlu0.c.b16.cont [5/8] 0, 128
    %200 = vxpose.xlu0.c.b16.cont [6/8] 0, 128
    %201 = vxpose.xlu0.c.b16.cont [7/8] 0, 128
    %202 = vxpose.xlu0.c.b16.end [8/8] 0, 128
    %v203 = vpop.trf.xlu0
    %v204 = vpop.trf.xlu0
    %v205 = vpop.trf.xlu0
    %v206 = vpop.trf.xlu0
    %v207 = vpop.trf.xlu0
    %v208 = vpop.trf.xlu0
    %v209 = vpop.trf.xlu0
    %v210 = vpop.trf.xlu0
    %vm211 = vsmask.f32 7424
    %v213 = vshrl.u32 %v77, 16
    %v215 = vshll.u32 %v77, 16
    %v217 = vrot.slane %v215, 1
    %v218 = vor.u32 %v213, %v217
    %v220 = vshll.u32 %v78, 16
    %v222 = vrot.slane %v220, 1
    %v223 = vsel %vm211, %v218, %v222
    %v224 = vshrl.u32 %v78, 16
    %v226 = vor.u32 %v224, %v222
    %vm228 = vcmask 252928
    %v230 = vsel %vm228, %v203, 0
    %v233 = vsel %vm228, %v204, 0
    %v236 = vsel %vm228, %v205, 0
    %v239 = vsel %vm228, %v206, 0
    %v242 = vsel %vm228, %v207, 0
    %v245 = vsel %vm228, %v208, 0
    %v248 = vsel %vm228, %v209, 0
    %v251 = vsel %vm228, %v210, 0
    %vm253 = vcmask 1046528
    %vm254 = vcmask 1047552
    %v255 = vsel %vm253, 4294967295, 65535
    %v256 = vsel %vm254, %v255, 0
    %v258 = vand.u32 %v226, %v256
    %260 = vmatprep.subr.bf16.mxu0 0
    %261 = vmatpush1.bf16.msra.mxu0 %v223
    %262 = vmatprep.subr.bf16.mxu0 0
    %263 = vmatpush1.bf16.msra.mxu0 %v258
    %264 = vmatprep.subr.bf16.mxu0 0
    %265 = vmatpush1.bf16.msra.mxu0 0
    %266 = vmatprep.subr.bf16.mxu0 0
    %267 = vmatpush1.bf16.msra.mxu0 0
    %268 = vmatprep.subr.bf16.mxu0 0
    %269 = vmatpush1.bf16.msra.mxu0 0
    %270 = vmatprep.subr.bf16.mxu0 0
    %271 = vmatpush1.bf16.msra.mxu0 0
    %272 = vmatprep.subr.bf16.mxu0 0
    %273 = vmatpush1.bf16.msra.mxu0 0
    %274 = vmatprep.subr.bf16.mxu0 0
    %275 = vmatpush1.bf16.msra.mxu0 0
    %276 = vmatprep.subr.bf16.mxu0 0
    %277 = vmatpush1.bf16.msra.mxu0 0
    %278 = vmatprep.subr.bf16.mxu0 0
    %279 = vmatpush1.bf16.msra.mxu0 0
    %280 = vmatprep.subr.bf16.mxu0 0
    %281 = vmatpush1.bf16.msra.mxu0 0
    %282 = vmatprep.subr.bf16.mxu0 0
    %283 = vmatpush1.bf16.msra.mxu0 0
    %284 = vmatprep.subr.bf16.mxu0 0
    %285 = vmatpush1.bf16.msra.mxu0 0
    %286 = vmatprep.subr.bf16.mxu0 0
    %287 = vmatpush1.bf16.msra.mxu0 0
    %288 = vmatprep.subr.bf16.mxu0 0
    %289 = vmatpush1.bf16.msra.mxu0 0
    %290 = vmatprep.subr.bf16.mxu0 0
    %291 = vmatpush1.bf16.msra.mxu0 0
    %292 = vmatprep.mubr.bf16.mxu0 0
    %293 = vmatmul.mubr.bf16.gmra.mrb[0].mxu0 %v230
    %v294 = vpop.f32.mrb[0].mxu0
    %v295 = vadd.f32 0.0, %v294
    %v296 = vpop.f32.mrb[0].mxu0
    %v297 = vpop.f32.mrb[0].mxu0
    %v298 = vadd.f32 0.0, %v297
    %v299 = vpop.f32.mrb[0].mxu0
    %300 = vmatprep.mubr.bf16.mxu0 0
    %301 = vmatmul.mubr.bf16.gmra.mrb[0].mxu0 %v233
    %v302 = vpop.f32.mrb[0].mxu0
    %v303 = vadd.f32 0.0, %v302
    %v304 = vpop.f32.mrb[0].mxu0
    %v305 = vpop.f32.mrb[0].mxu0
    %v306 = vadd.f32 0.0, %v305
    %v307 = vpop.f32.mrb[0].mxu0
    %308 = vmatprep.mubr.bf16.mxu0 0
    %309 = vmatmul.mubr.bf16.gmra.mrb[0].mxu0 %v236
    %v310 = vpop.f32.mrb[0].mxu0
    %v311 = vadd.f32 0.0, %v310
    %v312 = vpop.f32.mrb[0].mxu0
    %v313 = vpop.f32.mrb[0].mxu0
    %v314 = vadd.f32 0.0, %v313
    %v315 = vpop.f32.mrb[0].mxu0
    %316 = vmatprep.mubr.bf16.mxu0 0
    %317 = vmatmul.mubr.bf16.gmra.mrb[0].mxu0 %v239
    %v318 = vpop.f32.mrb[0].mxu0
    %v319 = vadd.f32 0.0, %v318
    %v320 = vpop.f32.mrb[0].mxu0
    %v321 = vpop.f32.mrb[0].mxu0
    %v322 = vadd.f32 0.0, %v321
    %v323 = vpop.f32.mrb[0].mxu0
    %324 = vmatprep.mubr.bf16.mxu0 0
    %325 = vmatmul.mubr.bf16.gmra.mrb[0].mxu0 %v242
    %v326 = vpop.f32.mrb[0].mxu0
    %v327 = vadd.f32 0.0, %v326
    %v328 = vpop.f32.mrb[0].mxu0
    %v329 = vpop.f32.mrb[0].mxu0
    %v330 = vadd.f32 0.0, %v329
    %v331 = vpop.f32.mrb[0].mxu0
    %332 = vmatprep.mubr.bf16.mxu0 0
    %333 = vmatmul.mubr.bf16.gmra.mrb[0].mxu0 %v245
    %v334 = vpop.f32.mrb[0].mxu0
    %v335 = vadd.f32 0.0, %v334
    %v336 = vpop.f32.mrb[0].mxu0
    %v337 = vpop.f32.mrb[0].mxu0
    %v338 = vadd.f32 0.0, %v337
    %v339 = vpop.f32.mrb[0].mxu0
    %340 = vmatprep.mubr.bf16.mxu0 0
    %341 = vmatmul.mubr.bf16.gmra.mrb[0].mxu0 %v248
    %v342 = vpop.f32.mrb[0].mxu0
    %v343 = vadd.f32 0.0, %v342
    %v344 = vpop.f32.mrb[0].mxu0
    %v345 = vpop.f32.mrb[0].mxu0
    %v346 = vadd.f32 0.0, %v345
    %v347 = vpop.f32.mrb[0].mxu0
    %348 = vmatprep.mubr.bf16.mxu0 0
    %349 = vmatmul.mubr.bf16.gmra.mrb[0].mxu0 %v251
    %v350 = vpop.f32.mrb[0].mxu0
    %v351 = vadd.f32 0.0, %v350
    %v352 = vpop.f32.mrb[0].mxu0
    %v353 = vpop.f32.mrb[0].mxu0
    %v354 = vadd.f32 0.0, %v353
    %v355 = vpop.f32.mrb[0].mxu0
    %356 = vdwg.mxu0
    %v357 = vadd.f32 %v167, %v295
    %v358 = vadd.f32 %v168, %v298
    %v359 = vadd.f32 %v169, %v303
    %v360 = vadd.f32 %v170, %v306
    %v361 = vadd.f32 %v171, %v311
    %v362 = vadd.f32 %v172, %v314
    %v363 = vadd.f32 %v173, %v319
    %v364 = vadd.f32 %v174, %v322
    %v365 = vadd.f32 %v175, %v327
    %v366 = vadd.f32 %v176, %v330
    %v367 = vadd.f32 %v177, %v335
    %v368 = vadd.f32 %v178, %v338
    %v369 = vadd.f32 %v179, %v343
    %v370 = vadd.f32 %v180, %v346
    %v371 = vadd.f32 %v181, %v351
    %v372 = vadd.f32 %v182, %v354
    %373 = vst [vmem:[#allocation5] sm:$0xff] %v357
    %374 = vst [vmem:[#allocation5 + $0x8] sm:$0xff] %v358
    %375 = vst [vmem:[#allocation5 + $0x10] sm:$0xff] %v359
    %376 = vst [vmem:[#allocation5 + $0x18] sm:$0xff] %v360
    %377 = vst [vmem:[#allocation5 + $0x20] sm:$0xff] %v361
    %378 = vst [vmem:[#allocation5 + $0x28] sm:$0xff] %v362
    %379 = vst [vmem:[#allocation5 + $0x30] sm:$0xff] %v363
    %380 = vst [vmem:[#allocation5 + $0x38] sm:$0xff] %v364
    %381 = vst [vmem:[#allocation5 + $0x40] sm:$0xff] %v365
    %382 = vst [vmem:[#allocation5 + $0x48] sm:$0xff] %v366
    %383 = vst [vmem:[#allocation5 + $0x50] sm:$0xff] %v367
    %384 = vst [vmem:[#allocation5 + $0x58] sm:$0xff] %v368
    %385 = vst [vmem:[#allocation5 + $0x60] sm:$0xff] %v369
    %386 = vst [vmem:[#allocation5 + $0x68] sm:$0xff] %v370
    %387 = vst [vmem:[#allocation5 + $0x70] sm:$0xff] %v371
    %388 = vst [vmem:[#allocation5 + $0x78] sm:$0xff] %v372
    // Predicated region
    $region14: #{tpu_custom_call.1} parent=1 // pred_check
      %p389 = pneg %p28
    $region15: #{tpu_custom_call.1} parent=1 // pred_check_branch
      %391 = sbr.rel (%p389) target = $region17
    $region16: #{tpu_custom_call.1} parent=1 // pred_region
      %v392 = vld [vmem:[#allocation5] sm:$0xff]
      %v393 = vld [vmem:[#allocation5 + $0x8] sm:$0xff]
      %v394 = vld [vmem:[#allocation5 + $0x10] sm:$0xff]
      %v395 = vld [vmem:[#allocation5 + $0x18] sm:$0xff]
      %v396 = vld [vmem:[#allocation5 + $0x20] sm:$0xff]
      %v397 = vld [vmem:[#allocation5 + $0x28] sm:$0xff]
      %v398 = vld [vmem:[#allocation5 + $0x30] sm:$0xff]
      %v399 = vld [vmem:[#allocation5 + $0x38] sm:$0xff]
      %v400 = vld [vmem:[#allocation5 + $0x40] sm:$0xff]
      %v401 = vld [vmem:[#allocation5 + $0x48] sm:$0xff]
      %v402 = vld [vmem:[#allocation5 + $0x50] sm:$0xff]
      %v403 = vld [vmem:[#allocation5 + $0x58] sm:$0xff]
      %v404 = vld [vmem:[#allocation5 + $0x60] sm:$0xff]
      %v405 = vld [vmem:[#allocation5 + $0x68] sm:$0xff]
      %v406 = vld [vmem:[#allocation5 + $0x70] sm:$0xff]
      %v407 = vld [vmem:[#allocation5 + $0x78] sm:$0xff]
      %vm408 = vcmp.lt.s32.totalorder %v57, 8
      %v409 = vsel %vm408, %v392, -1e+30
      %v410 = vsel %vm408, %v393, -1e+30
      %v411 = vsel %vm408, %v394, -1e+30
      %v412 = vsel %vm408, %v395, -1e+30
      %v413 = vsel %vm408, %v396, -1e+30
      %v414 = vsel %vm408, %v397, -1e+30
      %v415 = vsel %vm408, %v398, -1e+30
      %v416 = vsel %vm408, %v399, -1e+30
      %v417 = vsel %vm408, %v400, -1e+30
      %v418 = vsel %vm408, %v401, -1e+30
      %v419 = vsel %vm408, %v402, -1e+30
      %v420 = vsel %vm408, %v403, -1e+30
      %v421 = vsel %vm408, %v404, -1e+30
      %v422 = vsel %vm408, %v405, -1e+30
      %v423 = vsel %vm408, %v406, -1e+30
      %v424 = vsel %vm408, %v407, -1e+30
      %425 = vmax.xlane.f32.xlu0 %v409
      %v426 = vpop.xlane.xlu0 %425
      %427 = vmax.xlane.f32.xlu0 %v410
      %v428 = vpop.xlane.xlu0 %427
      %429 = vmax.xlane.f32.xlu0 %v411
      %v430 = vpop.xlane.xlu0 %429
      %431 = vmax.xlane.f32.xlu0 %v412
      %v432 = vpop.xlane.xlu0 %431
      %433 = vmax.xlane.f32.xlu0 %v413
      %v434 = vpop.xlane.xlu0 %433
      %435 = vmax.xlane.f32.xlu0 %v414
      %v436 = vpop.xlane.xlu0 %435
      %437 = vmax.xlane.f32.xlu0 %v415
      %v438 = vpop.xlane.xlu0 %437
      %439 = vmax.xlane.f32.xlu0 %v416
      %v440 = vpop.xlane.xlu0 %439
      %441 = vmax.xlane.f32.xlu0 %v417
      %v442 = vpop.xlane.xlu0 %441
      %443 = vmax.xlane.f32.xlu0 %v418
      %v444 = vpop.xlane.xlu0 %443
      %445 = vmax.xlane.f32.xlu0 %v419
      %v446 = vpop.xlane.xlu0 %445
      %447 = vmax.xlane.f32.xlu0 %v420
      %v448 = vpop.xlane.xlu0 %447
      %449 = vmax.xlane.f32.xlu0 %v421
      %v450 = vpop.xlane.xlu0 %449
      %451 = vmax.xlane.f32.xlu0 %v422
      %v452 = vpop.xlane.xlu0 %451
      %453 = vmax.xlane.f32.xlu0 %v423
      %v454 = vpop.xlane.xlu0 %453
      %455 = vmax.xlane.f32.xlu0 %v424
      %v456 = vpop.xlane.xlu0 %455
      %v457 = vsub.f32 %v409, %v426
      %v458 = vsub.f32 %v410, %v428
      %v459 = vsub.f32 %v411, %v430
      %v460 = vsub.f32 %v412, %v432
      %v461 = vsub.f32 %v413, %v434
      %v462 = vsub.f32 %v414, %v436
      %v463 = vsub.f32 %v415, %v438
      %v464 = vsub.f32 %v416, %v440
      %v465 = vsub.f32 %v417, %v442
      %v466 = vsub.f32 %v418, %v444
      %v467 = vsub.f32 %v419, %v446
      %v468 = vsub.f32 %v420, %v448
      %v469 = vsub.f32 %v421, %v450
      %v470 = vsub.f32 %v422, %v452
      %v471 = vsub.f32 %v423, %v454
      %v472 = vsub.f32 %v424, %v456
      %v473 = vmul.f32 %v457, 1.442695
      %v474 = vpow.pop %v473
      %v475 = vmul.f32 %v458, 1.442695
      %v476 = vpow.pop %v475
      %v477 = vmul.f32 %v459, 1.442695
      %v478 = vpow.pop %v477
      %v479 = vmul.f32 %v460, 1.442695
      %v480 = vpow.pop %v479
      %v481 = vmul.f32 %v461, 1.442695
      %v482 = vpow.pop %v481
      %v483 = vmul.f32 %v462, 1.442695
      %v484 = vpow.pop %v483
      %v485 = vmul.f32 %v463, 1.442695
      %v486 = vpow.pop %v485
      %v487 = vmul.f32 %v464, 1.442695
      %v488 = vpow.pop %v487
      %v489 = vmul.f32 %v465, 1.442695
      %v490 = vpow.pop %v489
      %v491 = vmul.f32 %v466, 1.442695
      %v492 = vpow.pop %v491
      %v493 = vmul.f32 %v467, 1.442695
      %v494 = vpow.pop %v493
      %v495 = vmul.f32 %v468, 1.442695
      %v496 = vpow.pop %v495
      %v497 = vmul.f32 %v469, 1.442695
      %v498 = vpow.pop %v497
      %v499 = vmul.f32 %v470, 1.442695
      %v500 = vpow.pop %v499
      %v501 = vmul.f32 %v471, 1.442695
      %v502 = vpow.pop %v501
      %v503 = vmul.f32 %v472, 1.442695
      %v504 = vpow.pop %v503
      %v505 = vsel %vm408, %v474, 0.0
      %v506 = vsel %vm408, %v476, 0.0
      %v507 = vsel %vm408, %v478, 0.0
      %v508 = vsel %vm408, %v480, 0.0
      %v509 = vsel %vm408, %v482, 0.0
      %v510 = vsel %vm408, %v484, 0.0
      %v511 = vsel %vm408, %v486, 0.0
      %v512 = vsel %vm408, %v488, 0.0
      %v513 = vsel %vm408, %v490, 0.0
      %v514 = vsel %vm408, %v492, 0.0
      %v515 = vsel %vm408, %v494, 0.0
      %v516 = vsel %vm408, %v496, 0.0
      %v517 = vsel %vm408, %v498, 0.0
      %v518 = vsel %vm408, %v500, 0.0
      %v519 = vsel %vm408, %v502, 0.0
      %v520 = vsel %vm408, %v504, 0.0
      %521 = vadd.xlane.f32.xlu0 %v505
      %v522 = vpop.xlane.xlu0 %521
      %523 = vadd.xlane.f32.xlu0 %v506
      %v524 = vpop.xlane.xlu0 %523
      %525 = vadd.xlane.f32.xlu0 %v507
      %v526 = vpop.xlane.xlu0 %525
      %527 = vadd.xlane.f32.xlu0 %v508
      %v528 = vpop.xlane.xlu0 %527
      %529 = vadd.xlane.f32.xlu0 %v509
      %v530 = vpop.xlane.xlu0 %529
      %531 = vadd.xlane.f32.xlu0 %v510
      %v532 = vpop.xlane.xlu0 %531
      %533 = vadd.xlane.f32.xlu0 %v511
      %v534 = vpop.xlane.xlu0 %533
      %535 = vadd.xlane.f32.xlu0 %v512
      %v536 = vpop.xlane.xlu0 %535
      %537 = vadd.xlane.f32.xlu0 %v513
      %v538 = vpop.xlane.xlu0 %537
      %539 = vadd.xlane.f32.xlu0 %v514
      %v540 = vpop.xlane.xlu0 %539
      %541 = vadd.xlane.f32.xlu0 %v515
      %v542 = vpop.xlane.xlu0 %541
      %543 = vadd.xlane.f32.xlu0 %v516
      %v544 = vpop.xlane.xlu0 %543
      %545 = vadd.xlane.f32.xlu0 %v517
      %v546 = vpop.xlane.xlu0 %545
      %547 = vadd.xlane.f32.xlu0 %v518
      %v548 = vpop.xlane.xlu0 %547
      %549 = vadd.xlane.f32.xlu0 %v519
      %v550 = vpop.xlane.xlu0 %549
      %551 = vadd.xlane.f32.xlu0 %v520
      %v552 = vpop.xlane.xlu0 %551
      %v553 = vrcp.pop %v522
      %v554 = vmul.f32 %v505, %v553
      %v555 = vrcp.pop %v524
      %v556 = vmul.f32 %v506, %v555
      %v557 = vrcp.pop %v526
      %v558 = vmul.f32 %v507, %v557
      %v559 = vrcp.pop %v528
      %v560 = vmul.f32 %v508, %v559
      %v561 = vrcp.pop %v530
      %v562 = vmul.f32 %v509, %v561
      %v563 = vrcp.pop %v532
      %v564 = vmul.f32 %v510, %v563
      %v565 = vrcp.pop %v534
      %v566 = vmul.f32 %v511, %v565
      %v567 = vrcp.pop %v536
      %v568 = vmul.f32 %v512, %v567
      %v569 = vrcp.pop %v538
      %v570 = vmul.f32 %v513, %v569
      %v571 = vrcp.pop %v540
      %v572 = vmul.f32 %v514, %v571
      %v573 = vrcp.pop %v542
      %v574 = vmul.f32 %v515, %v573
      %v575 = vrcp.pop %v544
      %v576 = vmul.f32 %v516, %v575
      %v577 = vrcp.pop %v546
      %v578 = vmul.f32 %v517, %v577
      %v579 = vrcp.pop %v548
      %v580 = vmul.f32 %v518, %v579
      %v581 = vrcp.pop %v550
      %v582 = vmul.f32 %v519, %v581
      %v583 = vrcp.pop %v552
      %v584 = vmul.f32 %v520, %v583
      %585 = vst [vmem:[#allocation5] sm:$0xff] %v554
      %586 = vst [vmem:[#allocation5 + $0x8] sm:$0xff] %v556
      %587 = vst [vmem:[#allocation5 + $0x10] sm:$0xff] %v558
      %588 = vst [vmem:[#allocation5 + $0x18] sm:$0xff] %v560
      %589 = vst [vmem:[#allocation5 + $0x20] sm:$0xff] %v562
      %590 = vst [vmem:[#allocation5 + $0x28] sm:$0xff] %v564
      %591 = vst [vmem:[#allocation5 + $0x30] sm:$0xff] %v566
      %592 = vst [vmem:[#allocation5 + $0x38] sm:$0xff] %v568
      %593 = vst [vmem:[#allocation5 + $0x40] sm:$0xff] %v570
      %594 = vst [vmem:[#allocation5 + $0x48] sm:$0xff] %v572
      %595 = vst [vmem:[#allocation5 + $0x50] sm:$0xff] %v574
      %596 = vst [vmem:[#allocation5 + $0x58] sm:$0xff] %v576
      %597 = vst [vmem:[#allocation5 + $0x60] sm:$0xff] %v578
      %598 = vst [vmem:[#allocation5 + $0x68] sm:$0xff] %v580
      %599 = vst [vmem:[#allocation5 + $0x70] sm:$0xff] %v582
      %600 = vst [vmem:[#allocation5 + $0x78] sm:$0xff] %v584
      %v601 = vld [vmem:[#allocation6] sm:$0x1]
      %v602 = vsel %vm408, %v601, -1e+30
      %vm603 = vcmask 1040384
      %v604 = vsel %vm603, %v602, -inf
      %605 = vmax.xlane.f32.xlu0 %v604
      %v606 = vpop.xlane.xlu0 %605
      %v607 = vsub.f32 %v602, %v606
      %v608 = vmul.f32 %v607, 1.442695
      %v609 = vpow.pop %v608
      %v610 = vsel %vm408, %v609, 0.0
      %v611 = vsel %vm603, %v610, 0.0
      %612 = vadd.xlane.f32.xlu0 %v611
      %v613 = vpop.xlane.xlu0 %612
      %v614 = vrcp.pop %v613
      %v615 = vmul.f32 %v610, %v614
      %616 = vst [vmem:[#allocation6] sm:$0x1] %v615
      %v617 = vld [vmem:[#allocation8] sm:$0x1]
      %v618 = vsel %vm408, %v617, -1e+30
      %v619 = vsel %vm603, %v618, -inf
      %620 = vmax.xlane.f32.xlu0 %v619
      %v621 = vpop.xlane.xlu0 %620
      %v622 = vsub.f32 %v618, %v621
      %v623 = vmul.f32 %v622, 1.442695
      %v624 = vpow.pop %v623
      %v625 = vsel %vm408, %v624, 0.0
      %v626 = vsel %vm603, %v625, 0.0
      %627 = vadd.xlane.f32.xlu0 %v626
      %v628 = vpop.xlane.xlu0 %627
      %v629 = vrcp.pop %v628
      %v630 = vmul.f32 %v625, %v629
      %631 = vst [vmem:[#allocation8] sm:$0x1] %v630
    $region17: #{tpu_custom_call.1} parent=1 // pred_fallthru
      _
    // Predicated region
    $region18: #{tpu_custom_call.1} parent=1 // pred_check
      _
    $region19: #{tpu_custom_call.1} parent=1 // pred_check_branch
      %633 = sbr.rel (0) target = $region21
    $region20: #{tpu_custom_call.1} parent=1 // pred_region
      %s635 = ssub.s32 2048, 2048
      %636 = vsyncadd [#allocation4], %s635
      %s637 = sshll.u32 [#allocation5], 4
      %s638 = int_to_ptr.vmem [resolvable:$true] %s637
      %643 = dma.vmem_to_hbm [thread:$0]  %s638, 2048, %s1, [#allocation4], 128, 128, 8
    $region21: #{tpu_custom_call.1} parent=1 // pred_fallthru
      _
    // Predicated region
    $region22: #{tpu_custom_call.1} parent=1 // pred_check
      _
    $region23: #{tpu_custom_call.1} parent=1 // pred_check_branch
      %645 = sbr.rel (0) target = $region25
    $region24: #{tpu_custom_call.1} parent=1 // pred_region
      %s647 = ssub.s32 16, 16
      %648 = vsyncadd [#allocation7], %s647
      %s650 = sshll.u32 [#allocation6], 4
      %s651 = int_to_ptr.vmem [resolvable:$true] %s650
      %653 = dma.vmem_to_hbm [thread:$0]  %s651, 16, %s2, [#allocation7]
    $region25: #{tpu_custom_call.1} parent=1 // pred_fallthru
      _
    // Predicated region
    $region26: #{tpu_custom_call.1} parent=1 // pred_check
      _
    $region27: #{tpu_custom_call.1} parent=1 // pred_check_branch
      %655 = sbr.rel (0) target = $region29
    $region28: #{tpu_custom_call.1} parent=1 // pred_region
      %s657 = ssub.s32 16, 16
      %658 = vsyncadd [#allocation7], %s657
      %s660 = sshll.u32 [#allocation8], 4
      %s661 = int_to_ptr.vmem [resolvable:$true] %s660
      %663 = dma.vmem_to_hbm [thread:$0]  %s661, 16, %s3, [#allocation7]
    $region29: #{tpu_custom_call.1} parent=1 // pred_fallthru
      _
    // Predicated region
    $region30: #{tpu_custom_call.1} parent=1 // pred_check
      _
    $region31: #{tpu_custom_call.1} parent=1 // pred_check_branch
      %665 = sbr.rel (0) target = $region33
    $region32: #{tpu_custom_call.1} parent=1 // pred_region
      %666 = dma.done [#allocation4], 2048
    $region33: #{tpu_custom_call.1} parent=1 // pred_fallthru
      _
    // Predicated region
    $region34: #{tpu_custom_call.1} parent=1 // pred_check
      _
    $region35: #{tpu_custom_call.1} parent=1 // pred_check_branch
      %668 = sbr.rel (0) target = $region37
    $region36: #{tpu_custom_call.1} parent=1 // pred_region
      %669 = dma.done [#allocation7], 16
    $region37: #{tpu_custom_call.1} parent=1 // pred_fallthru
      _
    // Predicated region
    $region38: #{tpu_custom_call.1} parent=1 // pred_check
      _
    $region39: #{tpu_custom_call.1} parent=1 // pred_check_branch
      %671 = sbr.rel (0) target = $region41
    $region40: #{tpu_custom_call.1} parent=1 // pred_region
      %672 = dma.done [#allocation7], 16
    $region41: #{tpu_custom_call.1} parent=1 // pred_fallthru
      _
    %673 = vsyncpa [#allocation3], 1
    %674 = vsyncpa [#allocation4], 1
    %675 = vsyncpa [#allocation7], 1

</llo_original>
